<compile_context>
chip_gen: v6e
topology: v6e:2x2x1
jax: 0.10.0
libtpu: 0.0.40
codegen_flags: <defaults>
</compile_context>

<pallas_src>
import functools

import jax
import jax.numpy as jnp
from jax.experimental import pallas as pl
from jax.experimental.pallas import tpu as pltpu


def _round_up(x, m):
    return ((x + m - 1) // m) * m


@functools.lru_cache(maxsize=None)
def _tpu_matmul_defaults():
    """(tm, tn, vmem_limit_bytes) chosen per TPU generation."""
    try:
        cap = pltpu.get_tpu_info().vmem_capacity_bytes
    except Exception:  # interpret mode / unknown target
        cap = 64 * 1024 * 1024
    if cap >= 100 * 1024 * 1024:          # v5e / v6e: 128 MiB VMEM per core
        return 512, 256, 64 * 1024 * 1024
    return 256, 256, 32 * 1024 * 1024     # v7x: 64 MiB VMEM per TensorCore


def _pad2(x, rp, cp, dtype):
    r, c = x.shape
    x = x.astype(dtype)
    if r == rp and c == cp:               # skip the pad copy when aligned
        return x
    return jnp.zeros((rp, cp), dtype).at[:r, :c].set(x)


# --------------------------------------------------------------------------
# Kernel 1: generic tiled matmul (A @ B^T and A @ B), f32 MXU accumulation.
# --------------------------------------------------------------------------
def _matmul_kernel(a_ref, b_ref, o_ref, acc_ref, *, dims):
    @pl.when(pl.program_id(2) == 0)
    def _init():
        acc_ref[...] = jnp.zeros_like(acc_ref)

    acc_ref[...] += jax.lax.dot_general(
        a_ref[...], b_ref[...], (dims, ((), ())),
        preferred_element_type=jnp.float32)

    @pl.when(pl.program_id(2) == pl.num_programs(2) - 1)
    def _store():
        o_ref[...] = acc_ref[...].astype(o_ref.dtype)


def _tiled_matmul(a, b, *, rhs_contract_axis, compute_dtype=jnp.float32,
                  tm=None, tn=None, tk=None):
    """rhs_contract_axis=1 -> a @ b.T ; rhs_contract_axis=0 -> a @ b.  f32 out."""
    def_tm, def_tn, vmem_limit = _tpu_matmul_defaults()
    m1, d = a.shape
    if rhs_contract_axis == 1:
        m2, d2 = b.shape
    else:
        d2, m2 = b.shape
    assert d == d2

    if tm is None:
        tm = def_tm
    if tn is None:
        tn = def_tn
    if tk is None:
        itemsize = jax.dtypes.canonicalize_dtype(compute_dtype).itemsize
        tk = 1024 if itemsize <= 2 else 512
    tm = min(tm, _round_up(m1, 8))
    tn = min(tn, _round_up(m2, 128))
    tk = min(tk, _round_up(d, 128))
    mp, np_, kp = _round_up(m1, tm), _round_up(m2, tn), _round_up(d, tk)

    a_p = _pad2(a, mp, kp, compute_dtype)
    if rhs_contract_axis == 1:
        b_p = _pad2(b, np_, kp, compute_dtype)
        b_spec = pl.BlockSpec((tn, tk), lambda i, j, k: (j, k))
        dims = ((1,), (1,))
    else:
        b_p = _pad2(b, kp, np_, compute_dtype)
        b_spec = pl.BlockSpec((tk, tn), lambda i, j, k: (k, j))
        dims = ((1,), (0,))

    out = pl.pallas_call(
        functools.partial(_matmul_kernel, dims=dims),
        out_shape=jax.ShapeDtypeStruct((mp, np_), jnp.float32),
        grid_spec=pltpu.PrefetchScalarGridSpec(
            num_scalar_prefetch=0,
            grid=(mp // tm, np_ // tn, kp // tk),
            in_specs=[pl.BlockSpec((tm, tk), lambda i, j, k: (i, k)), b_spec],
            out_specs=pl.BlockSpec((tm, tn), lambda i, j, k: (i, j)),
            scratch_shapes=[pltpu.VMEM((tm, tn), jnp.float32)]),
        compiler_params=pltpu.CompilerParams(
            dimension_semantics=("parallel", "parallel", "arbitrary"),
            vmem_limit_bytes=vmem_limit),
    )(a_p, b_p)
    if out.shape != (m1, m2):
        out = out[:m1, :m2]
    return out


def matmul_abt(a, b, **kw):
    """out[i, j] = sum_d a[i, d] * b[j, d]."""
    return _tiled_matmul(a, b, rhs_contract_axis=1, **kw)


def matmul_ab(a, b, **kw):
    """out[i, j] = sum_d a[i, d] * b[d, j]."""
    return _tiled_matmul(a, b, rhs_contract_axis=0, **kw)


# --------------------------------------------------------------------------
# Kernel 2: blocked approximate-NNK (ISTA) solve.
# Layout: K on sublanes, samples on lanes.  a3[k, j, t] = AtA_t[j, k] (sym.).
# eta stays a (1, TB) row; all sublane broadcasts are implicit (1,TB)*(Kp,TB)
# products so Mosaic keeps a replicated layout (no materialized broadcasts).
# --------------------------------------------------------------------------
def _nnk_solve_kernel(a3_ref, b_ref, eta_ref, ssim_ref, x_ref, err_ref,
                      *, num_iter, x_tol):
    b = b_ref[...]                 # (Kp, TB)
    eta = eta_ref[...]             # (1, TB), broadcast at use
    ssim = ssim_ref[...]           # (1, TB)
    kp = b.shape[0]

    def matvec(x):
        acc = a3_ref[0] * x[0:1, :]
        for k in range(1, kp):
            acc = acc + a3_ref[k] * x[k:k + 1, :]
        return acc

    def body(_, x):
        grad = b - matvec(x)
        # torch clamp(min=0, max=b): min applied first, then max
        return jnp.minimum(jnp.maximum(x + eta * grad, 0.0), b)

    x = jax.lax.fori_loop(0, num_iter, body, b)
    x = jnp.where(x < x_tol, 0.0, x)

    ax = matvec(x)
    err = -2.0 * jnp.sum(x * (b - 0.5 * ax), axis=0, keepdims=True)  # (1, TB)
    err_ref[...] = (ssim + err) / ssim

    # L1 normalize (torch F.normalize p=1, eps=1e-12)
    l1 = jnp.maximum(jnp.sum(jnp.abs(x), axis=0, keepdims=True), 1e-12)
    x_ref[...] = x / l1


def nnk_solve(ata_kkb, b_sim, eta, self_sim, *, num_iter, x_tol, tb=128):
    """ata_kkb: (K,K,B), b_sim: (B,K), eta: (B,), self_sim: (B,) -> (B,K), (B,)."""
    K, _, B = ata_kkb.shape
    kp = _round_up(K, 8)
    # TB=128 keeps loop-carried state (x + b + matvec acc) at ~3*Kp*128/1024
    # vregs (<= ~21 at K=50), eliminating spills in the 1000-iter loop; each
    # grid step carries ~num_iter iterations so step overhead is negligible,
    # and B > 128 gives >= 2 grid steps for the 2 TensorCores on v7x.
    bp = _round_up(B, tb)

    a3 = jnp.zeros((kp, kp, bp), jnp.float32).at[:K, :K, :B].set(
        ata_kkb.astype(jnp.float32))
    b_p = jnp.zeros((kp, bp), jnp.float32).at[:K, :B].set(
        b_sim.astype(jnp.float32).T)
    eta_p = jnp.zeros((1, bp), jnp.float32).at[0, :B].set(eta)
    ssim_p = jnp.ones((1, bp), jnp.float32).at[0, :B].set(self_sim)  # avoid 0/0

    _, _, vmem_limit = _tpu_matmul_defaults()
    kernel = functools.partial(_nnk_solve_kernel, num_iter=num_iter, x_tol=x_tol)
    x_p, err_p = pl.pallas_call(
        kernel,
        out_shape=(jax.ShapeDtypeStruct((kp, bp), jnp.float32),
                   jax.ShapeDtypeStruct((1, bp), jnp.float32)),
        grid_spec=pltpu.PrefetchScalarGridSpec(
            num_scalar_prefetch=0,
            grid=(bp // tb,),
            in_specs=[pl.BlockSpec((kp, kp, tb), lambda i: (0, 0, i)),
                      pl.BlockSpec((kp, tb), lambda i: (0, i)),
                      pl.BlockSpec((1, tb), lambda i: (0, i)),
                      pl.BlockSpec((1, tb), lambda i: (0, i))],
            out_specs=(pl.BlockSpec((kp, tb), lambda i: (0, i)),
                       pl.BlockSpec((1, tb), lambda i: (0, i)))),
        compiler_params=pltpu.CompilerParams(
            dimension_semantics=("parallel",),
            vmem_limit_bytes=vmem_limit),
    )(a3, b_p, eta_p, ssim_p)

    x_opt = x_p[:K, :B].T            # (B, K)
    error = err_p[0, :B]             # (B,)
    return x_opt, error


# --------------------------------------------------------------------------
# NNK_Means (functional JAX state; hot paths in Pallas)
# --------------------------------------------------------------------------
class NNKMeans:
    def __init__(self, n_components=100, n_nonzero_coefs=50, momentum=1.0,
                 n_classes=None, influence_tol=1e-4, optim_itr=1000,
                 optim_lr=None, optim_tol=1e-6, use_error_based_buffer=True,
                 use_residual_update=False, similarity_dtype=jnp.float32,
                 auto_lr_mode="gershgorin"):
        # similarity_dtype=jnp.bfloat16 halves HBM traffic / doubles MXU rate on
        # v6e/v7x (f32 accumulation) but can flip top-k selection -> opt-in.
        # auto_lr_mode: "gershgorin" (fast upper bound on lambda_max) or
        # "eigvalsh" (bit-parity with the PyTorch reference, slow on TPU).
        self.n_components = n_components
        self.n_nonzero_coefs = n_nonzero_coefs
        self.momentum = momentum
        self.n_classes = n_classes
        self.influence_tol = influence_tol
        self.optim_itr = optim_itr
        self.optim_lr = optim_lr
        self.optim_tol = optim_tol
        self.use_error_based_buffer = use_error_based_buffer
        self.use_residual_update = use_residual_update
        self.similarity_dtype = similarity_dtype
        self.auto_lr_mode = auto_lr_mode
        self.dictionary_atoms = None
        self.dictionary_atoms_norm = None
        self.data_cache = None
        self.influence_cache = None
        self.dictionary_data_buffer = None
        self.associated_error = None
        self._gram = None          # cached Dn @ Dn^T
        self._dict_sim = None      # cached similarity-dtype cast of Dn

    @staticmethod
    def _process_data(data):
        # torch F.normalize(dim=1), eps=1e-12
        nrm = jnp.sqrt(jnp.sum(data * data, axis=1, keepdims=True))
        return data / jnp.maximum(nrm, 1e-12)

    def _invalidate_derived(self):
        self._gram = None
        self._dict_sim = None

    def initialize_dictionary(self, initial_data):
        self.dictionary_atoms = jnp.asarray(initial_data, jnp.float32)
        self.dictionary_atoms_norm = self._process_data(self.dictionary_atoms)
        self._invalidate_derived()
        self._set_cache()

    def _set_cache(self):
        self.dictionary_data_buffer = jnp.array(self.dictionary_atoms)
        self.data_cache = jnp.zeros_like(self.dictionary_atoms)
        self.associated_error = jnp.zeros((self.n_components,), jnp.float32)
        self.influence_cache = jnp.zeros(
            (self.n_components, self.n_components), jnp.float32)

    def reset_cache(self):
        self._set_cache()

    def _get_gram(self):
        if self._gram is None:
            self._gram = matmul_abt(self.dictionary_atoms_norm,
                                    self.dictionary_atoms_norm,
                                    compute_dtype=jnp.float32)
        return self._gram

    def _get_dict_sim(self):
        if self._dict_sim is None:
            self._dict_sim = self.dictionary_atoms_norm.astype(
                self.similarity_dtype)
        return self._dict_sim

    def _sparse_code(self, batch_data):
        sims = matmul_abt(batch_data, self._get_dict_sim(),
                          compute_dtype=self.similarity_dtype)          # (B, M)
        sub_sims, sub_indices = jax.lax.top_k(sims, self.n_nonzero_coefs)

        # AtA entries already exist in the dictionary Gram: gather directly in
        # the (K, K, B) layout the solve kernel wants (no HBM transpose pass).
        gram = self._get_gram()
        idx_t = sub_indices.T                                            # (K, B)
        ata_kkb = gram[idx_t[:, None, :], idx_t[None, :, :]]             # (K,K,B)

        if self.optim_lr is not None:
            eta = jnp.full((sims.shape[0],), self.optim_lr, jnp.float32)
        elif self.auto_lr_mode == "gershgorin":
            # lambda_max <= max_j sum_k |A[j,k]|  ->  eta = 1/bound <= 1/lambda_max
            bound = jnp.max(jnp.sum(jnp.abs(ata_kkb), axis=1), axis=0)   # (B,)
            eta = 1.0 / jnp.maximum(bound, 1e-12)
        else:
            # reference-exact learning rate (slow batched eigvalsh on TPU)
            ev = jnp.linalg.eigvalsh(jnp.transpose(ata_kkb, (2, 0, 1)))
            eta = 1.0 / jnp.max(jnp.abs(ev), axis=1)                     # (B,)

        self_sims = jnp.sum(batch_data * batch_data, axis=1)             # (B,)
        x_opt, error = nnk_solve(ata_kkb, sub_sims, eta, self_sims,
                                 num_iter=self.optim_itr, x_tol=self.optim_tol)
        return x_opt, sub_indices, error

    def _update_cache(self, W, batch_data):
        # W: (n_components, B).  Small glue matmuls, plain XLA.
        self.data_cache = self.data_cache + self.momentum * (W @ batch_data)
        self.influence_cache = self.influence_cache + self.momentum * (W @ W.T)

    def _update_buffer(self, batch_data, error):
        n = self.n_components
        base_indices = jnp.arange(n, dtype=jnp.int32)
        if self.use_error_based_buffer:
            cat_err = jnp.concatenate([self.associated_error, error])
            top_vals, top_idx = jax.lax.top_k(cat_err, n)
            replace = jnp.min(error) > jnp.min(self.associated_error)
            indices = jnp.where(replace, top_idx.astype(jnp.int32), base_indices)
            self.associated_error = jnp.where(replace, top_vals,
                                              self.associated_error)
        else:
            indices = base_indices  # TODO(synk): random buffer strategy not implemented
        temp = jnp.concatenate([self.dictionary_data_buffer, batch_data])
        self.dictionary_data_buffer = temp[indices]

    def _update_dict_inv(self):
        diag = jnp.diagonal(self.influence_cache)
        full = jnp.sum(diag > self.influence_tol) >= self.n_components

        def _solve(ops):
            influence, data, _ = ops
            return jnp.linalg.solve(influence, data)   # faster/stabler than inv @

        def _keep(ops):
            return ops[2]

        self.dictionary_atoms = jax.lax.cond(
            full, _solve, _keep,
            (self.influence_cache, self.data_cache, self.dictionary_atoms))
        self.dictionary_atoms_norm = self._process_data(self.dictionary_atoms)
        self._invalidate_derived()

    def update_dict(self):
        # TODO(synk): residual update variant not implemented (default path is inv).
        self._update_dict_inv()

    def forward(self, batch_data, batch_label=None, update_cache=True,
                update_dict=True, get_codes=False):
        batch_data = jnp.asarray(batch_data, jnp.float32)
        batch_size = batch_data.shape[0]
        x_opt, indices, error = self._sparse_code(batch_data)

        # Dense code matrix Wt (B, n_components); Wt.T is the sparse W of the
        # reference.  Reused for the cache update AND the interpolation matmul.
        rows = jnp.arange(batch_size, dtype=jnp.int32)[:, None]
        Wt = jnp.zeros((batch_size, self.n_components), jnp.float32)
        Wt = Wt.at[rows, indices].add(x_opt)

        if update_cache:
            self._update_cache(Wt.T, batch_data)
            self._update_buffer(batch_data, error)
        if update_dict:
            self.update_dict()

        # interpolation on the MXU: (B, M) @ (M, D)  ==  sum_k x[b,k]*atoms[idx]
        interpolated = matmul_ab(Wt, self.dictionary_atoms,
                                 compute_dtype=jnp.float32)
        label_interpolated = None   # TODO(synk): n_classes/label path not implemented

        if get_codes:
            return batch_data, interpolated, label_interpolated, Wt
        return batch_data, interpolated, label_interpolated, x_opt, indices, error


NNK_Means = NNKMeans  # alias matching the PyTorch class name


# --------------------------------------------------------------------------
if __name__ == "__main__":
    key = jax.random.PRNGKey(0)
    k_dict, k_batch = jax.random.split(key)

    M, K, D, B = 64, 8, 32, 8     # n_components, n_nonzero_coefs, feat dim, batch
    model = NNKMeans(n_components=M, n_nonzero_coefs=K, momentum=1.0,
                     n_classes=None, optim_itr=100, optim_lr=None,
                     optim_tol=1e-6)

    initial_data = jax.random.normal(k_dict, (M, D), jnp.float32)
    model.initialize_dictionary(initial_data)

    batch = jax.random.normal(k_batch, (B, D), jnp.float32)
    out = model.forward(batch)

    jax.block_until_ready(out[1])   # interpolated
    jax.block_until_ready(out[3])   # x_opt
    jax.block_until_ready(out[5])   # error
    print("KERNEL_OK")
</pallas_src>

<mosaic_0001>
module attributes {stable_mosaic.version = 11 : i64} {
  func.func @_matmul_kernel(%arg0: i32, %arg1: i32, %arg2: i32, %arg3: memref<8x128xf32, #tpu.memory_space<vmem>>, %arg4: memref<128x128xf32, #tpu.memory_space<vmem>>, %arg5: memref<8x128xf32, #tpu.memory_space<vmem>>, %arg6: memref<8x128xf32, #tpu.memory_space<vmem>>) attributes {dimension_semantics = [#tpu.dimension_semantics<parallel>, #tpu.dimension_semantics<parallel>, #tpu.dimension_semantics<arbitrary>], iteration_bounds = array<i64: 1, 1, 1>, scalar_prefetch = 0 : i64, scratch_operands = 1 : i64, tpu.core_type = #tpu.core_type<tc>, window_params = [{transform_indices = @transform_0, window_bounds = array<i64: 8, 128>}, {transform_indices = @transform_1, window_bounds = array<i64: 128, 128>}, {transform_indices = @transform_2, window_bounds = array<i64: 8, 128>}]} {
    %c0_i32 = arith.constant 0 : i32
    %0 = arith.cmpi eq, %arg2, %c0_i32 : i32
    %1 = arith.extui %0 : i1 to i32
    %c0_i32_0 = arith.constant 0 : i32
    %2 = arith.cmpi ne, %1, %c0_i32_0 : i32
    scf.if %2 {
      %cst_10 = arith.constant 0.000000e+00 : f32
      %12 = vector.broadcast %cst_10 : f32 to vector<8x128xf32>
      %c0_11 = arith.constant 0 : index
      %c0_12 = arith.constant 0 : index
      %13 = vector.load %arg6[%c0_11, %c0_12] : memref<8x128xf32, #tpu.memory_space<vmem>>, vector<8x128xf32>
      tpu.vector_store %arg6[%c0_11, %c0_12], %12 {strides = array<i32>} : memref<8x128xf32, #tpu.memory_space<vmem>>, vector<8x128xf32>,
    } else {
    }
    %c0 = arith.constant 0 : index
    %c0_1 = arith.constant 0 : index
    %3 = vector.load %arg6[%c0, %c0_1] : memref<8x128xf32, #tpu.memory_space<vmem>>, vector<8x128xf32>
    %c0_2 = arith.constant 0 : index
    %c0_3 = arith.constant 0 : index
    %4 = vector.load %arg3[%c0_2, %c0_3] : memref<8x128xf32, #tpu.memory_space<vmem>>, vector<8x128xf32>
    %c0_4 = arith.constant 0 : index
    %c0_5 = arith.constant 0 : index
    %5 = vector.load %arg4[%c0_4, %c0_5] : memref<128x128xf32, #tpu.memory_space<vmem>>, vector<128x128xf32>
    %cst = arith.constant dense<0.000000e+00> : vector<8x128xf32>
    %6 = tpu.matmul %4, %5, %cst {dimension_numbers = #tpu.dot_dimension_numbers<[1], [1], [0], [0], [0, 0, 1, 0], [], []>} : vector<8x128xf32>, vector<128x128xf32>, vector<8x128xf32> -> vector<8x128xf32>
    %7 = arith.addf %3, %6 : vector<8x128xf32>
    %c0_6 = arith.constant 0 : index
    %c0_7 = arith.constant 0 : index
    %8 = vector.load %arg6[%c0_6, %c0_7] : memref<8x128xf32, #tpu.memory_space<vmem>>, vector<8x128xf32>
    tpu.vector_store %arg6[%c0_6, %c0_7], %7 {strides = array<i32>} : memref<8x128xf32, #tpu.memory_space<vmem>>, vector<8x128xf32>,
    %c0_i32_8 = arith.constant 0 : i32
    %9 = arith.cmpi eq, %arg2, %c0_i32_8 : i32
    %10 = arith.extui %9 : i1 to i32
    %c0_i32_9 = arith.constant 0 : i32
    %11 = arith.cmpi ne, %10, %c0_i32_9 : i32
    scf.if %11 {
      %c0_10 = arith.constant 0 : index
      %c0_11 = arith.constant 0 : index
      %12 = vector.load %arg6[%c0_10, %c0_11] : memref<8x128xf32, #tpu.memory_space<vmem>>, vector<8x128xf32>
      %c0_12 = arith.constant 0 : index
      %c0_13 = arith.constant 0 : index
      %13 = vector.load %arg5[%c0_12, %c0_13] : memref<8x128xf32, #tpu.memory_space<vmem>>, vector<8x128xf32>
      tpu.vector_store %arg5[%c0_12, %c0_13], %12 {strides = array<i32>} : memref<8x128xf32, #tpu.memory_space<vmem>>, vector<8x128xf32>,
    } else {
    }
    return
  }
  func.func @transform_0(%arg0: i32, %arg1: i32, %arg2: i32) -> (i32, i32) {
    %c0_i32 = arith.constant 0 : i32
    return %arg0, %arg2 : i32, i32
  }
  func.func @transform_1(%arg0: i32, %arg1: i32, %arg2: i32) -> (i32, i32) {
    %c0_i32 = arith.constant 0 : i32
    return %arg1, %arg2 : i32, i32
  }
  func.func @transform_2(%arg0: i32, %arg1: i32, %arg2: i32) -> (i32, i32) {
    %c0_i32 = arith.constant 0 : i32
    return %arg0, %arg1 : i32, i32
  }
}

</mosaic_0001>

<llo_original>
// kernel: tpu_custom_call.1
$region0: #{tpu_custom_call.1}
  #allocation0 [shape = 'u32[]', space=smem, size = 0x4, offset = 0x4, fixed_abs, tag = 'smem constant byte address 0x4 - core index']
  #allocation1 [shape = 'u32[144,128]{1,0:T(1,128)}', space=vmem, size = 0x12000, scoped, tag = 'internal scratch']
  #allocation2 [shape = 'f32[8,128]{1,0:T(8,128)}', space=vmem, size = 0x1000, scoped, tag = 'scratch operand']
  %s0 = inlined_call_operand.hbm [shape: f32[8,128], index: 0, kind: input, shape index: {}]
  %s1 = inlined_call_operand.hbm [shape: f32[128,128], index: 1, kind: input, shape index: {}]
  %s2 = inlined_call_operand.hbm [shape: f32[8,128], index: 2, kind: output, shape index: {}]
  %s3 = sld [smem:[#allocation0]]
  $region34: #{tpu_custom_call.1} parent=0
    _
  %s5 = ssub.s32 1, %s3
  %s6 = scalar_select 0, %s5, %s3
  $region1: #{tpu_custom_call.1} parent=0
    #allocation3 [shape = 'u8[4096]{0}', space=vmem, size = 0x1000, scoped, tag = 'input window, operand 0, single buffered']
    #allocation4 [shape = 's32[1]{0}', space=sflag, size = 0x4, scoped, tag = 'scoped memory for tpu_custom_call.1']
    #allocation5 [shape = 's32[1]{0}', space=sflag, size = 0x4, scoped, tag = 'scoped memory for tpu_custom_call.1']
    #allocation6 [shape = 'u8[65536]{0}', space=vmem, size = 0x10000, scoped, tag = 'input window, operand 1, single buffered']
    #allocation7 [shape = 's32[1]{0}', space=sflag, size = 0x4, scoped, tag = 'scoped memory for tpu_custom_call.1']
    #allocation8 [shape = 'u8[4096]{0}', space=vmem, size = 0x1000, scoped, tag = 'output window, operand 0, single buffered']
    %7 = vsyncpa [#allocation4], 0
    %8 = vsyncpa [#allocation7], 0
    %9 = vsyncpa [#allocation5], 0
    // Predicated region
    $region2: #{tpu_custom_call.1} parent=1 // pred_check
      _
    $region3: #{tpu_custom_call.1} parent=1 // pred_check_branch
      %11 = sbr.rel (0) target = $region5
    $region4: #{tpu_custom_call.1} parent=1 // pred_region
      %s13 = ssub.s32 128, 128
      %14 = vsyncadd [#allocation4], %s13
      %s16 = sshll.u32 [#allocation3], 4
      %s17 = int_to_ptr.vmem [resolvable:$true] %s16
      %19 = dma.hbm_to_vmem [thread:$0]  %s0, 128, %s17, [#allocation4]
    $region5: #{tpu_custom_call.1} parent=1 // pred_fallthru
      _
    // Predicated region
    $region6: #{tpu_custom_call.1} parent=1 // pred_check
      _
    $region7: #{tpu_custom_call.1} parent=1 // pred_check_branch
      %21 = sbr.rel (0) target = $region9
    $region8: #{tpu_custom_call.1} parent=1 // pred_region
      %s23 = ssub.s32 2048, 2048
      %24 = vsyncadd [#allocation7], %s23
      %s25 = sshll.u32 [#allocation6], 4
      %s26 = int_to_ptr.vmem [resolvable:$true] %s25
      %31 = dma.hbm_to_vmem [thread:$0]  %s1, 2048, %s26, [#allocation7], 128, 128, 8
    $region9: #{tpu_custom_call.1} parent=1 // pred_fallthru
      _
    // Predicated region
    $region10: #{tpu_custom_call.1} parent=1 // pred_check
      _
    $region11: #{tpu_custom_call.1} parent=1 // pred_check_branch
      %33 = sbr.rel (0) target = $region13
    $region12: #{tpu_custom_call.1} parent=1 // pred_region
      %34 = dma.done [#allocation4], 128
    $region13: #{tpu_custom_call.1} parent=1 // pred_fallthru
      _
    // Predicated region
    $region14: #{tpu_custom_call.1} parent=1 // pred_check
      _
    $region15: #{tpu_custom_call.1} parent=1 // pred_check_branch
      %36 = sbr.rel (0) target = $region17
    $region16: #{tpu_custom_call.1} parent=1 // pred_region
      %37 = dma.done [#allocation7], 2048
    $region17: #{tpu_custom_call.1} parent=1 // pred_fallthru
      _
    %p38 = scmp.eq.s32.totalorder 0, 0
    // Predicated region
    $region18: #{tpu_custom_call.1} parent=1 // pred_check
      %p39 = pneg %p38
    $region19: #{tpu_custom_call.1} parent=1 // pred_check_branch
      %41 = sbr.rel (%p39) target = $region21
    $region20: #{tpu_custom_call.1} parent=1 // pred_region
      %42 = vst [vmem:[#allocation2] sm:$0xff] 0.0
    $region21: #{tpu_custom_call.1} parent=1 // pred_fallthru
      _
    %v43 = vld [vmem:[#allocation2] sm:$0xff]
    %v44 = vld [vmem:[#allocation3] sm:$0xff]
    %v45 = vld [vmem:[#allocation6] sm:$0xff]
    %v46 = vld [vmem:[#allocation6 + $0x8] sm:$0xff]
    %v47 = vld [vmem:[#allocation6 + $0x10] sm:$0xff]
    %v48 = vld [vmem:[#allocation6 + $0x18] sm:$0xff]
    %v49 = vld [vmem:[#allocation6 + $0x20] sm:$0xff]
    %v50 = vld [vmem:[#allocation6 + $0x28] sm:$0xff]
    %v51 = vld [vmem:[#allocation6 + $0x30] sm:$0xff]
    %v52 = vld [vmem:[#allocation6 + $0x38] sm:$0xff]
    %v53 = vld [vmem:[#allocation6 + $0x40] sm:$0xff]
    %v54 = vld [vmem:[#allocation6 + $0x48] sm:$0xff]
    %v55 = vld [vmem:[#allocation6 + $0x50] sm:$0xff]
    %v56 = vld [vmem:[#allocation6 + $0x58] sm:$0xff]
    %v57 = vld [vmem:[#allocation6 + $0x60] sm:$0xff]
    %v58 = vld [vmem:[#allocation6 + $0x68] sm:$0xff]
    %v59 = vld [vmem:[#allocation6 + $0x70] sm:$0xff]
    %v60 = vld [vmem:[#allocation6 + $0x78] sm:$0xff]
    %61 = vmatprep.subr.mxu0 0.0
    %62 = vmatpush1.xpose.msra.mxu0 %v60
    %63 = vmatprep.subr.mxu0 0.0
    %64 = vmatpush1.xpose.msra.mxu0 %v59
    %65 = vmatprep.subr.mxu0 0.0
    %66 = vmatpush1.xpose.msra.mxu0 %v58
    %67 = vmatprep.subr.mxu0 0.0
    %68 = vmatpush1.xpose.msra.mxu0 %v57
    %69 = vmatprep.subr.mxu0 0.0
    %70 = vmatpush1.xpose.msra.mxu0 %v56
    %71 = vmatprep.subr.mxu0 0.0
    %72 = vmatpush1.xpose.msra.mxu0 %v55
    %73 = vmatprep.subr.mxu0 0.0
    %74 = vmatpush1.xpose.msra.mxu0 %v54
    %75 = vmatprep.subr.mxu0 0.0
    %76 = vmatpush1.xpose.msra.mxu0 %v53
    %77 = vmatprep.subr.mxu0 0.0
    %78 = vmatpush1.xpose.msra.mxu0 %v52
    %79 = vmatprep.subr.mxu0 0.0
    %80 = vmatpush1.xpose.msra.mxu0 %v51
    %81 = vmatprep.subr.mxu0 0.0
    %82 = vmatpush1.xpose.msra.mxu0 %v50
    %83 = vmatprep.subr.mxu0 0.0
    %84 = vmatpush1.xpose.msra.mxu0 %v49
    %85 = vmatprep.subr.mxu0 0.0
    %86 = vmatpush1.xpose.msra.mxu0 %v48
    %87 = vmatprep.subr.mxu0 0.0
    %88 = vmatpush1.xpose.msra.mxu0 %v47
    %89 = vmatprep.subr.mxu0 0.0
    %90 = vmatpush1.xpose.msra.mxu0 %v46
    %91 = vmatprep.subr.mxu0 0.0
    %92 = vmatpush1.xpose.msra.mxu0 %v45
    %93 = vmatprep.subr.mxu0 0.0
    %94 = vmatpush2.xpose.msra.mxu0 0.0
    %95 = vmatprep.subr.mxu0 0.0
    %96 = vmatpush2.xpose.msra.mxu0 0.0
    %97 = vmatprep.subr.mxu0 0.0
    %98 = vmatpush2.xpose.msra.mxu0 0.0
    %99 = vmatprep.subr.mxu0 0.0
    %100 = vmatpush2.xpose.msra.mxu0 0.0
    %101 = vmatprep.subr.mxu0 0.0
    %102 = vmatpush2.xpose.msra.mxu0 0.0
    %103 = vmatprep.subr.mxu0 0.0
    %104 = vmatpush2.xpose.msra.mxu0 0.0
    %105 = vmatprep.subr.mxu0 0.0
    %106 = vmatpush2.xpose.msra.mxu0 0.0
    %107 = vmatprep.subr.mxu0 0.0
    %108 = vmatpush2.xpose.msra.mxu0 0.0
    %109 = vmatprep.subr.mxu0 0.0
    %110 = vmatpush2.xpose.msra.mxu0 0.0
    %111 = vmatprep.subr.mxu0 0.0
    %112 = vmatpush2.xpose.msra.mxu0 0.0
    %113 = vmatprep.subr.mxu0 0.0
    %114 = vmatpush2.xpose.msra.mxu0 0.0
    %115 = vmatprep.subr.mxu0 0.0
    %116 = vmatpush2.xpose.msra.mxu0 0.0
    %117 = vmatprep.subr.mxu0 0.0
    %118 = vmatpush2.xpose.msra.mxu0 0.0
    %119 = vmatprep.subr.mxu0 0.0
    %120 = vmatpush2.xpose.msra.mxu0 0.0
    %121 = vmatprep.subr.mxu0 0.0
    %122 = vmatpush2.xpose.msra.mxu0 0.0
    %123 = vmatprep.subr.mxu0 0.0
    %124 = vmatpush2.xpose.msra.mxu0 0.0
    %125 = vmatprep.mubr.f32.mxu0 0.0
    %126 = vmatmul.mubr.f32.gmra.mxu0 %v44
    %v127 = vpop.f32.mrf.mxu0
    %v128 = vadd.f32 0.0, %v127
    %v129 = vpop.f32.mrf.mxu0
    %130 = vdwg.mxu0
    %v131 = vadd.f32 %v43, %v128
    %132 = vst [vmem:[#allocation2] sm:$0xff] %v131
    // Predicated region
    $region22: #{tpu_custom_call.1} parent=1 // pred_check
      %p133 = pneg %p38
    $region23: #{tpu_custom_call.1} parent=1 // pred_check_branch
      %135 = sbr.rel (%p133) target = $region25
    $region24: #{tpu_custom_call.1} parent=1 // pred_region
      %v136 = vld [vmem:[#allocation2] sm:$0xff]
      %137 = vst [vmem:[#allocation8] sm:$0xff] %v136
    $region25: #{tpu_custom_call.1} parent=1 // pred_fallthru
      _
    // Predicated region
    $region26: #{tpu_custom_call.1} parent=1 // pred_check
      _
    $region27: #{tpu_custom_call.1} parent=1 // pred_check_branch
      %139 = sbr.rel (0) target = $region29
    $region28: #{tpu_custom_call.1} parent=1 // pred_region
      %s141 = ssub.s32 128, 128
      %142 = vsyncadd [#allocation5], %s141
      %s144 = sshll.u32 [#allocation8], 4
      %s145 = int_to_ptr.vmem [resolvable:$true] %s144
      %147 = dma.vmem_to_hbm [thread:$0]  %s145, 128, %s2, [#allocation5]
    $region29: #{tpu_custom_call.1} parent=1 // pred_fallthru
      _
    // Predicated region
    $region30: #{tpu_custom_call.1} parent=1 // pred_check
      _
    $region31: #{tpu_custom_call.1} parent=1 // pred_check_branch
      %149 = sbr.rel (0) target = $region33
    $region32: #{tpu_custom_call.1} parent=1 // pred_region
      %150 = dma.done [#allocation5], 128
    $region33: #{tpu_custom_call.1} parent=1 // pred_fallthru
      _
    %151 = vsyncpa [#allocation4], 1
    %152 = vsyncpa [#allocation7], 1
    %153 = vsyncpa [#allocation5], 1

</llo_original>
